<compile_context>
chip_gen: v6e
topology: v6e:2x2x1
jax: 0.10.0
libtpu: 0.0.40
codegen_flags: <defaults>
</compile_context>

<pallas_src>
import functools

import jax
import jax.numpy as jnp
import numpy as np
from jax.experimental import pallas as pl
from jax.experimental.pallas import tpu as pltpu


def _round_up(x, m):
  return ((x + m - 1) // m) * m


def _gnn_kernel(a_ref, h_ref, w_ref, b_ref, out_ref, *, steps, n, hp, tb):
  """One batch-tile of the gated graph cell, `steps` recurrence steps."""
  f32 = jnp.float32
  m = tb * n

  # Static lane slices of the unsplit adjacency block (TB, N, 2N).
  a_in = a_ref[:, :, 0:n]          # (TB, N, N)
  a_out = a_ref[:, :, n:2 * n]     # (TB, N, N)

  bias = b_ref[...]                # (8, Hp) packed bias slab
  b_ei, b_eo = bias[0:1], bias[1:2]
  b_iah, b_oah = bias[2:3], bias[3:4]
  b_r, b_i = bias[4:5], bias[5:6]
  b_in, b_hn = bias[6:7], bias[7:8]

  # Packed weight slab (Hp, 11*Hp): [Wei^T|Weo^T|Whr^T|Whi^T|Whn^T | Wxin | Wxout]
  w_h = w_ref[:, 0:5 * hp]         # (Hp, 5Hp)  h-side (edge_in, edge_out, hh r/i/n)
  w_xin = w_ref[:, 5 * hp:8 * hp]  # (Hp, 3Hp)  x_in-side gate weights (r,i,n)
  w_xout = w_ref[:, 8 * hp:11 * hp]

  h = h_ref[...].reshape(m, hp)    # (M, Hp), M = TB*N

  # `steps` is a small static int: unrolled in-kernel recurrence keeps h and
  # the packed weights VMEM-resident across steps.
  for _ in range(steps):
    # All h-side matmuls fused into one (M,Hp)x(Hp,5Hp) MXU launch.
    hw = jnp.dot(h, w_h, preferred_element_type=f32)          # (M, 5Hp)
    h_in = (hw[:, 0:hp] + b_ei).reshape(tb, n, hp)            # linear_edge_in(h)
    h_out = (hw[:, hp:2 * hp] + b_eo).reshape(tb, n, hp)      # linear_edge_out(h)
    gh_r = hw[:, 2 * hp:3 * hp]
    gh_i = hw[:, 3 * hp:4 * hp]
    h_n = hw[:, 4 * hp:5 * hp] + b_hn

    # Per-graph message passing (batched over the TB graphs in this tile).
    x_in = jnp.einsum("bnk,bkh->bnh", a_in, h_in,
                      preferred_element_type=f32).reshape(m, hp) + b_iah
    x_out = jnp.einsum("bnk,bkh->bnh", a_out, h_out,
                       preferred_element_type=f32).reshape(m, hp) + b_oah

    # Gate matmuls fused per input stream: (M,Hp)x(Hp,3Hp).
    gxi = jnp.dot(x_in, w_xin, preferred_element_type=f32)    # (M, 3Hp)
    gxo = jnp.dot(x_out, w_xout, preferred_element_type=f32)  # (M, 3Hp)

    g_r = gxi[:, 0:hp] + gxo[:, 0:hp] + gh_r + b_r
    g_i = gxi[:, hp:2 * hp] + gxo[:, hp:2 * hp] + gh_i + b_i
    i_n = gxi[:, 2 * hp:3 * hp] + gxo[:, 2 * hp:3 * hp] + b_in

    resetgate = jax.nn.sigmoid(g_r)
    inputgate = jax.nn.sigmoid(g_i)
    newgate = jnp.tanh(i_n + resetgate * h_n)
    h = newgate + inputgate * (h - newgate)

  out_ref[...] = h.reshape(tb, n, hp).astype(out_ref.dtype)


def _pack_params(params, H, Hp):
  """Pack all weights into one (Hp, 11Hp) slab and all biases into (8, Hp)."""
  f32 = jnp.float32
  w_ih = params["w_ih"].astype(f32)
  w_hh = params["w_hh"].astype(f32)

  def pad_mat(w):  # (H, H) -> (Hp, Hp), zero-padded
    return jnp.pad(w, ((0, Hp - w.shape[0]), (0, Hp - w.shape[1])))

  def pad_vec(v):  # (H,) -> (1, Hp), zero-padded
    return jnp.pad(v.astype(f32), (0, Hp - v.shape[0])).reshape(1, Hp)

  def gate(w, g):  # rows of gate g (r=0, i=1, n=2)
    return w[g * H:(g + 1) * H]

  # Weights are stored as (out, in) in the PyTorch module; transpose for h @ W.
  w_h = jnp.concatenate([
      pad_mat(params["w_edge_in"].astype(f32).T),
      pad_mat(params["w_edge_out"].astype(f32).T),
      pad_mat(gate(w_hh, 0).T),
      pad_mat(gate(w_hh, 1).T),
      pad_mat(gate(w_hh, 2).T),
  ], axis=1)                                                     # (Hp, 5Hp)
  w_xin = jnp.concatenate(
      [pad_mat(gate(w_ih, g)[:, :H].T) for g in range(3)], axis=1)   # (Hp, 3Hp)
  w_xout = jnp.concatenate(
      [pad_mat(gate(w_ih, g)[:, H:2 * H].T) for g in range(3)], axis=1)
  w_all = jnp.concatenate([w_h, w_xin, w_xout], axis=1)          # (Hp, 11Hp)

  b_ih, b_hh = params["b_ih"].astype(f32), params["b_hh"].astype(f32)
  b_all = jnp.concatenate([
      pad_vec(params["b_edge_in"]), pad_vec(params["b_edge_out"]),
      pad_vec(params["b_iah"]), pad_vec(params["b_oah"]),
      pad_vec(b_ih[:H] + b_hh[:H]),                 # reset-gate bias (pre-summed)
      pad_vec(b_ih[H:2 * H] + b_hh[H:2 * H]),       # input-gate bias (pre-summed)
      pad_vec(b_ih[2 * H:3 * H]),                   # new-gate input bias
      pad_vec(b_hh[2 * H:3 * H]),                   # new-gate hidden bias
  ], axis=0)                                                     # (8, Hp)
  return w_all, b_all


def _choose_batch_tile(B, N, Hp):
  """Pick TB so M = TB*N ~ 256 MXU rows while staying far under scoped VMEM."""
  tb = max(1, min(B, (256 + N - 1) // N))

  def vmem_estimate(t):
    m = t * N
    a_tile = t * N * 2 * N * 4
    h_tile = m * Hp * 4
    weights = Hp * 11 * Hp * 4 + 8 * Hp * 4
    live = m * 17 * Hp * 4          # rough bound on in-flight intermediates
    return 2 * (a_tile + 2 * h_tile) + weights + live

  while tb > 1 and vmem_estimate(tb) > 12 * 1024 * 1024:
    tb //= 2
  return tb


@functools.partial(jax.jit, static_argnames=("step",))
def gnn_forward_pallas(A, hidden, params, step=1):
  """Pallas implementation of GNN.forward."""
  B, N, twoN = A.shape
  H = hidden.shape[-1]
  assert twoN == 2 * N

  Hp = max(128, _round_up(H, 128))      # lane-dense feature dim
  TB = _choose_batch_tile(B, N, Hp)     # graphs per grid step
  Bp = _round_up(B, TB)

  A_p = jnp.pad(A.astype(jnp.float32), ((0, Bp - B), (0, 0), (0, 0)))
  h_p = jnp.pad(hidden.astype(jnp.float32),
                ((0, Bp - B), (0, 0), (0, Hp - H)))
  w_all, b_all = _pack_params(params, H, Hp)

  kernel = functools.partial(_gnn_kernel, steps=step, n=N, hp=Hp, tb=TB)

  out = pl.pallas_call(
      kernel,
      out_shape=jax.ShapeDtypeStruct((Bp, N, Hp), jnp.float32),
      grid=(Bp // TB,),
      in_specs=[
          pl.BlockSpec((TB, N, 2 * N), lambda b: (b, 0, 0)),   # A (unsplit)
          pl.BlockSpec((TB, N, Hp), lambda b: (b, 0, 0)),      # hidden (padded)
          pl.BlockSpec((Hp, 11 * Hp), lambda b: (0, 0)),       # packed weights
          pl.BlockSpec((8, Hp), lambda b: (0, 0)),             # packed biases
      ],
      out_specs=pl.BlockSpec((TB, N, Hp), lambda b: (b, 0, 0)),
      compiler_params=pltpu.CompilerParams(
          dimension_semantics=("parallel",),
          vmem_limit_bytes=32 * 1024 * 1024),
  )(A_p, h_p, w_all, b_all)

  return out[:B, :, :H].astype(hidden.dtype)


def init_gnn_params(key, hidden_size):
  """Deterministic SR-GNN-style init: uniform(-stdv, stdv), stdv=1/sqrt(H)."""
  H = hidden_size
  stdv = 1.0 / np.sqrt(H)
  names_shapes = [
      ("w_ih", (3 * H, 2 * H)),
      ("w_hh", (3 * H, H)),
      ("b_ih", (3 * H,)),
      ("b_hh", (3 * H,)),
      ("b_iah", (H,)),
      ("b_oah", (H,)),
      ("w_edge_in", (H, H)),
      ("b_edge_in", (H,)),
      ("w_edge_out", (H, H)),
      ("b_edge_out", (H,)),
      # TODO(synk): linear_edge_f is initialized in __init__ but never used in
      # forward(), so it is intentionally omitted here.
  ]
  keys = jax.random.split(key, len(names_shapes))
  return {
      name: jax.random.uniform(k, shape, jnp.float32, -stdv, stdv)
      for (name, shape), k in zip(names_shapes, keys)
  }


def gnn_forward_ref(A, hidden, params, step=1):
  """Pure-JAX reference mirroring the PyTorch forward exactly."""
  N = A.shape[1]
  H = hidden.shape[-1]
  h = hidden
  hi_prec = jax.lax.Precision.HIGHEST
  for _ in range(step):
    hi = jnp.matmul(h, params["w_edge_in"].T, precision=hi_prec) + params["b_edge_in"]
    ho = jnp.matmul(h, params["w_edge_out"].T, precision=hi_prec) + params["b_edge_out"]
    input_in = jnp.matmul(A[:, :, :N], hi, precision=hi_prec) + params["b_iah"]
    input_out = jnp.matmul(A[:, :, N:2 * N], ho, precision=hi_prec) + params["b_oah"]
    inputs = jnp.concatenate([input_in, input_out], axis=2)
    gi = jnp.matmul(inputs, params["w_ih"].T, precision=hi_prec) + params["b_ih"]
    gh = jnp.matmul(h, params["w_hh"].T, precision=hi_prec) + params["b_hh"]
    i_r, i_i, i_n = jnp.split(gi, 3, axis=2)
    h_r, h_i, h_n = jnp.split(gh, 3, axis=2)
    resetgate = jax.nn.sigmoid(i_r + h_r)
    inputgate = jax.nn.sigmoid(i_i + h_i)
    newgate = jnp.tanh(i_n + resetgate * h_n)
    h = newgate + inputgate * (h - newgate)
  return h


if __name__ == "__main__":
  B, N, H = 2, 8, 32
  step = 1

  key = jax.random.PRNGKey(0)
  k_params, k_A, k_h = jax.random.split(key, 3)

  params = init_gnn_params(k_params, H)
  A = jax.random.uniform(k_A, (B, N, 2 * N), jnp.float32)
  hidden = jax.random.uniform(k_h, (B, N, H), jnp.float32, -1.0, 1.0)

  out = gnn_forward_pallas(A, hidden, params, step=step)
  out = jax.block_until_ready(out)

  ref = gnn_forward_ref(A, hidden, params, step=step)
  # Kernel matmuls use the MXU's default f32 precision (bf16 passes) while the
  # reference runs at Precision.HIGHEST; 2e-3 comfortably covers that gap at
  # these shapes (H=32 contraction, bounded sigmoid/tanh outputs).
  np.testing.assert_allclose(np.asarray(out), np.asarray(ref),
                             rtol=2e-3, atol=2e-3)

  print("KERNEL_OK")
</pallas_src>

<mosaic_0001>
module attributes {stable_mosaic.version = 11 : i64} {
  func.func @_gnn_kernel(%arg0: i32, %arg1: memref<2x8x16xf32, #tpu.memory_space<vmem>>, %arg2: memref<2x8x128xf32, #tpu.memory_space<vmem>>, %arg3: memref<128x1408xf32, #tpu.memory_space<vmem>>, %arg4: memref<8x128xf32, #tpu.memory_space<vmem>>, %arg5: memref<2x8x128xf32, #tpu.memory_space<vmem>>) attributes {dimension_semantics = [#tpu.dimension_semantics<parallel>], iteration_bounds = array<i64: 1>, scalar_prefetch = 0 : i64, scratch_operands = 0 : i64, tpu.core_type = #tpu.core_type<tc>, window_params = [{transform_indices = @transform_0, window_bounds = array<i64: 2, 8, 16>}, {transform_indices = @transform_1, window_bounds = array<i64: 2, 8, 128>}, {pipeline_mode = #tpu.pipeline_mode<synchronous>, transform_indices = @transform_2, window_bounds = array<i64: 128, 1408>}, {pipeline_mode = #tpu.pipeline_mode<synchronous>, transform_indices = @transform_3, window_bounds = array<i64: 8, 128>}, {transform_indices = @transform_4, window_bounds = array<i64: 2, 8, 128>}]} {
    %c0 = arith.constant 0 : index
    %c0_0 = arith.constant 0 : index
    %c0_1 = arith.constant 0 : index
    %0 = vector.load %arg1[%c0, %c0_0, %c0_1] : memref<2x8x16xf32, #tpu.memory_space<vmem>>, vector<2x8x8xf32>
    %c0_2 = arith.constant 0 : index
    %c0_3 = arith.constant 0 : index
    %c8 = arith.constant 8 : index
    %1 = vector.load %arg1[%c0_2, %c0_3, %c8] : memref<2x8x16xf32, #tpu.memory_space<vmem>>, vector<2x8x8xf32>
    %c0_4 = arith.constant 0 : index
    %c0_5 = arith.constant 0 : index
    %2 = vector.load %arg4[%c0_4, %c0_5] : memref<8x128xf32, #tpu.memory_space<vmem>>, vector<8x128xf32>
    %3 = vector.extract_strided_slice %2 {offsets = [0, 0], sizes = [1, 128], strides = [1, 1]} : vector<8x128xf32> to vector<1x128xf32>
    %4 = vector.extract_strided_slice %2 {offsets = [1, 0], sizes = [1, 128], strides = [1, 1]} : vector<8x128xf32> to vector<1x128xf32>
    %5 = vector.extract_strided_slice %2 {offsets = [2, 0], sizes = [1, 128], strides = [1, 1]} : vector<8x128xf32> to vector<1x128xf32>
    %6 = vector.extract_strided_slice %2 {offsets = [3, 0], sizes = [1, 128], strides = [1, 1]} : vector<8x128xf32> to vector<1x128xf32>
    %7 = vector.extract_strided_slice %2 {offsets = [4, 0], sizes = [1, 128], strides = [1, 1]} : vector<8x128xf32> to vector<1x128xf32>
    %8 = vector.extract_strided_slice %2 {offsets = [5, 0], sizes = [1, 128], strides = [1, 1]} : vector<8x128xf32> to vector<1x128xf32>
    %9 = vector.extract_strided_slice %2 {offsets = [6, 0], sizes = [1, 128], strides = [1, 1]} : vector<8x128xf32> to vector<1x128xf32>
    %10 = vector.extract_strided_slice %2 {offsets = [7, 0], sizes = [1, 128], strides = [1, 1]} : vector<8x128xf32> to vector<1x128xf32>
    %c0_6 = arith.constant 0 : index
    %c0_7 = arith.constant 0 : index
    %11 = vector.load %arg3[%c0_6, %c0_7] : memref<128x1408xf32, #tpu.memory_space<vmem>>, vector<128x640xf32>
    %c0_8 = arith.constant 0 : index
    %c640 = arith.constant 640 : index
    %12 = vector.load %arg3[%c0_8, %c640] : memref<128x1408xf32, #tpu.memory_space<vmem>>, vector<128x384xf32>
    %c0_9 = arith.constant 0 : index
    %c1024 = arith.constant 1024 : index
    %13 = vector.load %arg3[%c0_9, %c1024] : memref<128x1408xf32, #tpu.memory_space<vmem>>, vector<128x384xf32>
    %c0_10 = arith.constant 0 : index
    %c0_11 = arith.constant 0 : index
    %c0_12 = arith.constant 0 : index
    %14 = vector.load %arg2[%c0_10, %c0_11, %c0_12] : memref<2x8x128xf32, #tpu.memory_space<vmem>>, vector<2x8x128xf32>
    %15 = vector.shape_cast %14 : vector<2x8x128xf32> to vector<16x128xf32>
    %cst = arith.constant dense<0.000000e+00> : vector<16x640xf32>
    %16 = tpu.matmul %15, %11, %cst {dimension_numbers = #tpu.dot_dimension_numbers<[1], [0], [0], [1], [0, 0, 1, 1], [], []>} : vector<16x128xf32>, vector<128x640xf32>, vector<16x640xf32> -> vector<16x640xf32>
    %17 = vector.extract_strided_slice %16 {offsets = [0, 0], sizes = [16, 128], strides = [1, 1]} : vector<16x640xf32> to vector<16x128xf32>
    %18 = vector.broadcast %3 : vector<1x128xf32> to vector<16x128xf32>
    %19 = arith.addf %17, %18 : vector<16x128xf32>
    %20 = vector.shape_cast %19 : vector<16x128xf32> to vector<2x8x128xf32>
    %21 = vector.extract_strided_slice %16 {offsets = [0, 128], sizes = [16, 128], strides = [1, 1]} : vector<16x640xf32> to vector<16x128xf32>
    %22 = vector.broadcast %4 : vector<1x128xf32> to vector<16x128xf32>
    %23 = arith.addf %21, %22 : vector<16x128xf32>
    %24 = vector.shape_cast %23 : vector<16x128xf32> to vector<2x8x128xf32>
    %25 = vector.extract_strided_slice %16 {offsets = [0, 256], sizes = [16, 128], strides = [1, 1]} : vector<16x640xf32> to vector<16x128xf32>
    %26 = vector.extract_strided_slice %16 {offsets = [0, 384], sizes = [16, 128], strides = [1, 1]} : vector<16x640xf32> to vector<16x128xf32>
    %27 = vector.extract_strided_slice %16 {offsets = [0, 512], sizes = [16, 128], strides = [1, 1]} : vector<16x640xf32> to vector<16x128xf32>
    %28 = vector.broadcast %10 : vector<1x128xf32> to vector<16x128xf32>
    %29 = arith.addf %27, %28 : vector<16x128xf32>
    "tpu.trace_start"() <{level = 10 : i32, message = "bnk,bkh->bnh"}> : () -> ()
    %cst_13 = arith.constant dense<0.000000e+00> : vector<2x8x128xf32>
    %30 = tpu.matmul %0, %20, %cst_13 {dimension_numbers = #tpu.dot_dimension_numbers<[2], [1], [1], [2], [0, 0, 0, 1, 1, 2], [0], [0]>} : vector<2x8x8xf32>, vector<2x8x128xf32>, vector<2x8x128xf32> -> vector<2x8x128xf32>
    "tpu.trace_stop"() : () -> ()
    %31 = vector.shape_cast %30 : vector<2x8x128xf32> to vector<16x128xf32>
    %32 = vector.broadcast %5 : vector<1x128xf32> to vector<16x128xf32>
    %33 = arith.addf %31, %32 : vector<16x128xf32>
    "tpu.trace_start"() <{level = 10 : i32, message = "bnk,bkh->bnh"}> : () -> ()
    %cst_14 = arith.constant dense<0.000000e+00> : vector<2x8x128xf32>
    %34 = tpu.matmul %1, %24, %cst_14 {dimension_numbers = #tpu.dot_dimension_numbers<[2], [1], [1], [2], [0, 0, 0, 1, 1, 2], [0], [0]>} : vector<2x8x8xf32>, vector<2x8x128xf32>, vector<2x8x128xf32> -> vector<2x8x128xf32>
    "tpu.trace_stop"() : () -> ()
    %35 = vector.shape_cast %34 : vector<2x8x128xf32> to vector<16x128xf32>
    %36 = vector.broadcast %6 : vector<1x128xf32> to vector<16x128xf32>
    %37 = arith.addf %35, %36 : vector<16x128xf32>
    %cst_15 = arith.constant dense<0.000000e+00> : vector<16x384xf32>
    %38 = tpu.matmul %33, %12, %cst_15 {dimension_numbers = #tpu.dot_dimension_numbers<[1], [0], [0], [1], [0, 0, 1, 1], [], []>} : vector<16x128xf32>, vector<128x384xf32>, vector<16x384xf32> -> vector<16x384xf32>
    %cst_16 = arith.constant dense<0.000000e+00> : vector<16x384xf32>
    %39 = tpu.matmul %37, %13, %cst_16 {dimension_numbers = #tpu.dot_dimension_numbers<[1], [0], [0], [1], [0, 0, 1, 1], [], []>} : vector<16x128xf32>, vector<128x384xf32>, vector<16x384xf32> -> vector<16x384xf32>
    %40 = vector.extract_strided_slice %38 {offsets = [0, 0], sizes = [16, 128], strides = [1, 1]} : vector<16x384xf32> to vector<16x128xf32>
    %41 = vector.extract_strided_slice %39 {offsets = [0, 0], sizes = [16, 128], strides = [1, 1]} : vector<16x384xf32> to vector<16x128xf32>
    %42 = arith.addf %40, %41 : vector<16x128xf32>
    %43 = arith.addf %42, %25 : vector<16x128xf32>
    %44 = vector.broadcast %7 : vector<1x128xf32> to vector<16x128xf32>
    %45 = arith.addf %43, %44 : vector<16x128xf32>
    %46 = vector.extract_strided_slice %38 {offsets = [0, 128], sizes = [16, 128], strides = [1, 1]} : vector<16x384xf32> to vector<16x128xf32>
    %47 = vector.extract_strided_slice %39 {offsets = [0, 128], sizes = [16, 128], strides = [1, 1]} : vector<16x384xf32> to vector<16x128xf32>
    %48 = arith.addf %46, %47 : vector<16x128xf32>
    %49 = arith.addf %48, %26 : vector<16x128xf32>
    %50 = vector.broadcast %8 : vector<1x128xf32> to vector<16x128xf32>
    %51 = arith.addf %49, %50 : vector<16x128xf32>
    %52 = vector.extract_strided_slice %38 {offsets = [0, 256], sizes = [16, 128], strides = [1, 1]} : vector<16x384xf32> to vector<16x128xf32>
    %53 = vector.extract_strided_slice %39 {offsets = [0, 256], sizes = [16, 128], strides = [1, 1]} : vector<16x384xf32> to vector<16x128xf32>
    %54 = arith.addf %52, %53 : vector<16x128xf32>
    %55 = vector.broadcast %9 : vector<1x128xf32> to vector<16x128xf32>
    %56 = arith.addf %54, %55 : vector<16x128xf32>
    %57 = arith.negf %45 : vector<16x128xf32>
    %58 = math.exp %57 : vector<16x128xf32>
    %cst_17 = arith.constant 1.000000e+00 : f32
    %59 = vector.broadcast %cst_17 : f32 to vector<16x128xf32>
    %60 = arith.addf %59, %58 : vector<16x128xf32>
    %61 = arith.divf %59, %60 : vector<16x128xf32>
    %62 = arith.negf %51 : vector<16x128xf32>
    %63 = math.exp %62 : vector<16x128xf32>
    %cst_18 = arith.constant 1.000000e+00 : f32
    %64 = vector.broadcast %cst_18 : f32 to vector<16x128xf32>
    %65 = arith.addf %64, %63 : vector<16x128xf32>
    %66 = arith.divf %64, %65 : vector<16x128xf32>
    %67 = arith.mulf %61, %29 : vector<16x128xf32>
    %68 = arith.addf %56, %67 : vector<16x128xf32>
    %69 = math.tanh %68 : vector<16x128xf32>
    %70 = arith.subf %15, %69 : vector<16x128xf32>
    %71 = arith.mulf %66, %70 : vector<16x128xf32>
    %72 = arith.addf %69, %71 : vector<16x128xf32>
    %73 = vector.shape_cast %72 : vector<16x128xf32> to vector<2x8x128xf32>
    %c0_19 = arith.constant 0 : index
    %c0_20 = arith.constant 0 : index
    %c0_21 = arith.constant 0 : index
    %74 = vector.load %arg5[%c0_19, %c0_20, %c0_21] : memref<2x8x128xf32, #tpu.memory_space<vmem>>, vector<2x8x128xf32>
    tpu.vector_store %arg5[%c0_19, %c0_20, %c0_21], %73 {strides = array<i32>} : memref<2x8x128xf32, #tpu.memory_space<vmem>>, vector<2x8x128xf32>,
    return
  }
  func.func @transform_0(%arg0: i32) -> (i32, i32, i32) {
    %c0_i32 = arith.constant 0 : i32
    %c0_i32_0 = arith.constant 0 : i32
    %c0_i32_1 = arith.constant 0 : i32
    return %arg0, %c0_i32, %c0_i32_0 : i32, i32, i32
  }
  func.func @transform_1(%arg0: i32) -> (i32, i32, i32) {
    %c0_i32 = arith.constant 0 : i32
    %c0_i32_0 = arith.constant 0 : i32
    %c0_i32_1 = arith.constant 0 : i32
    return %arg0, %c0_i32, %c0_i32_0 : i32, i32, i32
  }
  func.func @transform_2(%arg0: i32) -> (i32, i32) {
    %c0_i32 = arith.constant 0 : i32
    %c0_i32_0 = arith.constant 0 : i32
    %c0_i32_1 = arith.constant 0 : i32
    return %c0_i32, %c0_i32_0 : i32, i32
  }
  func.func @transform_3(%arg0: i32) -> (i32, i32) {
    %c0_i32 = arith.constant 0 : i32
    %c0_i32_0 = arith.constant 0 : i32
    %c0_i32_1 = arith.constant 0 : i32
    return %c0_i32, %c0_i32_0 : i32, i32
  }
  func.func @transform_4(%arg0: i32) -> (i32, i32, i32) {
    %c0_i32 = arith.constant 0 : i32
    %c0_i32_0 = arith.constant 0 : i32
    %c0_i32_1 = arith.constant 0 : i32
    return %arg0, %c0_i32, %c0_i32_0 : i32, i32, i32
  }
}

</mosaic_0001>

<llo_original>
// kernel: gnn_forward_pallas.1
$region0: #{gnn_forward_pallas.1}
  #allocation0 [shape = 'u32[]', space=smem, size = 0x4, offset = 0x4, fixed_abs, tag = 'smem constant byte address 0x4 - core index']
  #allocation1 [shape = 'u32[144,128]{1,0:T(1,128)}', space=vmem, size = 0x12000, scoped, tag = 'internal scratch']
  %s0 = inlined_call_operand.vmem [shape: f32[2,8,16], index: 0, kind: input, shape index: {}]
  %s1 = inlined_call_operand.vmem [shape: f32[2,8,128], index: 1, kind: input, shape index: {}]
  %s2 = inlined_call_operand.vmem [shape: f32[128,1408], index: 2, kind: input, shape index: {}]
  %s3 = inlined_call_operand.vmem [shape: f32[8,128], index: 3, kind: input, shape index: {}]
  %s4 = inlined_call_operand.hbm [shape: f32[2,8,128], index: 4, kind: output, shape index: {}]
  %s5 = sld [smem:[#allocation0]]
  $region26: #{gnn_forward_pallas.1} parent=0
    _
  %s7 = ssub.s32 1, %s5
  %s8 = scalar_select 0, %s7, %s5
  $region1: #{gnn_forward_pallas.1} parent=0
    #allocation2 [shape = 'u8[8192]{0}', space=vmem, size = 0x2000, scoped, tag = 'output window, operand 0, single buffered']
    #allocation3 [shape = 's32[1]{0}', space=sflag, size = 0x4, scoped, tag = 'scoped memory for gnn_forward_pallas.1']
    %9 = vsyncpa [#allocation3], 0
    // Predicated region
    $region2: #{gnn_forward_pallas.1} parent=1 // pred_check
      _
    $region3: #{gnn_forward_pallas.1} parent=1 // pred_check_branch
      %11 = sbr.rel (0) target = $region5
    $region4: #{gnn_forward_pallas.1} parent=1 // pred_region
      _
    $region5: #{gnn_forward_pallas.1} parent=1 // pred_fallthru
      _
    // Predicated region
    $region6: #{gnn_forward_pallas.1} parent=1 // pred_check
      _
    $region7: #{gnn_forward_pallas.1} parent=1 // pred_check_branch
      %13 = sbr.rel (0) target = $region9
    $region8: #{gnn_forward_pallas.1} parent=1 // pred_region
      _
    $region9: #{gnn_forward_pallas.1} parent=1 // pred_fallthru
      _
    // Predicated region
    $region10: #{gnn_forward_pallas.1} parent=1 // pred_check
      _
    $region11: #{gnn_forward_pallas.1} parent=1 // pred_check_branch
      %15 = sbr.rel (0) target = $region13
    $region12: #{gnn_forward_pallas.1} parent=1 // pred_region
      _
    $region13: #{gnn_forward_pallas.1} parent=1 // pred_fallthru
      _
    // Predicated region
    $region14: #{gnn_forward_pallas.1} parent=1 // pred_check
      _
    $region15: #{gnn_forward_pallas.1} parent=1 // pred_check_branch
      %17 = sbr.rel (0) target = $region17
    $region16: #{gnn_forward_pallas.1} parent=1 // pred_region
      _
    $region17: #{gnn_forward_pallas.1} parent=1 // pred_fallthru
      _
    %v18 = vld [vmem:[%s0] sm:$0xff]
    %v19 = vld [vmem:[%s0 + $0x8] sm:$0xff]
    %v20 = vld [vmem:[%s3] sm:$0xff]
    %v21 = vld [vmem:[%s2] sm:$0xff]
    %v22 = vld [vmem:[%s2 + $0x8] sm:$0xff]
    %v23 = vld [vmem:[%s2 + $0x10] sm:$0xff]
    %v24 = vld [vmem:[%s2 + $0x18] sm:$0xff]
    %v25 = vld [vmem:[%s2 + $0x20] sm:$0xff]
    %v26 = vld [vmem:[%s2 + $0x58] sm:$0xff]
    %v27 = vld [vmem:[%s2 + $0x60] sm:$0xff]
    %v28 = vld [vmem:[%s2 + $0x68] sm:$0xff]
    %v29 = vld [vmem:[%s2 + $0x70] sm:$0xff]
    %v30 = vld [vmem:[%s2 + $0x78] sm:$0xff]
    %v31 = vld [vmem:[%s2 + $0xb0] sm:$0xff]
    %v32 = vld [vmem:[%s2 + $0xb8] sm:$0xff]
    %v33 = vld [vmem:[%s2 + $0xc0] sm:$0xff]
    %v34 = vld [vmem:[%s2 + $0xc8] sm:$0xff]
    %v35 = vld [vmem:[%s2 + $0xd0] sm:$0xff]
    %v36 = vld [vmem:[%s2 + $0x108] sm:$0xff]
    %v37 = vld [vmem:[%s2 + $0x110] sm:$0xff]
    %v38 = vld [vmem:[%s2 + $0x118] sm:$0xff]
    %v39 = vld [vmem:[%s2 + $0x120] sm:$0xff]
    %v40 = vld [vmem:[%s2 + $0x128] sm:$0xff]
    %v41 = vld [vmem:[%s2 + $0x160] sm:$0xff]
    %v42 = vld [vmem:[%s2 + $0x168] sm:$0xff]
    %v43 = vld [vmem:[%s2 + $0x170] sm:$0xff]
    %v44 = vld [vmem:[%s2 + $0x178] sm:$0xff]
    %v45 = vld [vmem:[%s2 + $0x180] sm:$0xff]
    %v46 = vld [vmem:[%s2 + $0x1b8] sm:$0xff]
    %v47 = vld [vmem:[%s2 + $0x1c0] sm:$0xff]
    %v48 = vld [vmem:[%s2 + $0x1c8] sm:$0xff]
    %v49 = vld [vmem:[%s2 + $0x1d0] sm:$0xff]
    %v50 = vld [vmem:[%s2 + $0x1d8] sm:$0xff]
    %v51 = vld [vmem:[%s2 + $0x210] sm:$0xff]
    %v52 = vld [vmem:[%s2 + $0x218] sm:$0xff]
    %v53 = vld [vmem:[%s2 + $0x220] sm:$0xff]
    %v54 = vld [vmem:[%s2 + $0x228] sm:$0xff]
    %v55 = vld [vmem:[%s2 + $0x230] sm:$0xff]
    %v56 = vld [vmem:[%s2 + $0x268] sm:$0xff]
    %v57 = vld [vmem:[%s2 + $0x270] sm:$0xff]
    %v58 = vld [vmem:[%s2 + $0x278] sm:$0xff]
    %v59 = vld [vmem:[%s2 + $0x280] sm:$0xff]
    %v60 = vld [vmem:[%s2 + $0x288] sm:$0xff]
    %v61 = vld [vmem:[%s2 + $0x2c0] sm:$0xff]
    %v62 = vld [vmem:[%s2 + $0x2c8] sm:$0xff]
    %v63 = vld [vmem:[%s2 + $0x2d0] sm:$0xff]
    %v64 = vld [vmem:[%s2 + $0x2d8] sm:$0xff]
    %v65 = vld [vmem:[%s2 + $0x2e0] sm:$0xff]
    %v66 = vld [vmem:[%s2 + $0x318] sm:$0xff]
    %v67 = vld [vmem:[%s2 + $0x320] sm:$0xff]
    %v68 = vld [vmem:[%s2 + $0x328] sm:$0xff]
    %v69 = vld [vmem:[%s2 + $0x330] sm:$0xff]
    %v70 = vld [vmem:[%s2 + $0x338] sm:$0xff]
    %v71 = vld [vmem:[%s2 + $0x370] sm:$0xff]
    %v72 = vld [vmem:[%s2 + $0x378] sm:$0xff]
    %v73 = vld [vmem:[%s2 + $0x380] sm:$0xff]
    %v74 = vld [vmem:[%s2 + $0x388] sm:$0xff]
    %v75 = vld [vmem:[%s2 + $0x390] sm:$0xff]
    %v76 = vld [vmem:[%s2 + $0x3c8] sm:$0xff]
    %v77 = vld [vmem:[%s2 + $0x3d0] sm:$0xff]
    %v78 = vld [vmem:[%s2 + $0x3d8] sm:$0xff]
    %v79 = vld [vmem:[%s2 + $0x3e0] sm:$0xff]
    %v80 = vld [vmem:[%s2 + $0x3e8] sm:$0xff]
    %v81 = vld [vmem:[%s2 + $0x420] sm:$0xff]
    %v82 = vld [vmem:[%s2 + $0x428] sm:$0xff]
    %v83 = vld [vmem:[%s2 + $0x430] sm:$0xff]
    %v84 = vld [vmem:[%s2 + $0x438] sm:$0xff]
    %v85 = vld [vmem:[%s2 + $0x440] sm:$0xff]
    %v86 = vld [vmem:[%s2 + $0x478] sm:$0xff]
    %v87 = vld [vmem:[%s2 + $0x480] sm:$0xff]
    %v88 = vld [vmem:[%s2 + $0x488] sm:$0xff]
    %v89 = vld [vmem:[%s2 + $0x490] sm:$0xff]
    %v90 = vld [vmem:[%s2 + $0x498] sm:$0xff]
    %v91 = vld [vmem:[%s2 + $0x4d0] sm:$0xff]
    %v92 = vld [vmem:[%s2 + $0x4d8] sm:$0xff]
    %v93 = vld [vmem:[%s2 + $0x4e0] sm:$0xff]
    %v94 = vld [vmem:[%s2 + $0x4e8] sm:$0xff]
    %v95 = vld [vmem:[%s2 + $0x4f0] sm:$0xff]
    %v96 = vld [vmem:[%s2 + $0x528] sm:$0xff]
    %v97 = vld [vmem:[%s2 + $0x530] sm:$0xff]
    %v98 = vld [vmem:[%s2 + $0x538] sm:$0xff]
    %v99 = vld [vmem:[%s2 + $0x540] sm:$0xff]
    %v100 = vld [vmem:[%s2 + $0x548] sm:$0xff]
    %v101 = vld [vmem:[%s2 + $0x28] sm:$0xff]
    %v102 = vld [vmem:[%s2 + $0x30] sm:$0xff]
    %v103 = vld [vmem:[%s2 + $0x38] sm:$0xff]
    %v104 = vld [vmem:[%s2 + $0x80] sm:$0xff]
    %v105 = vld [vmem:[%s2 + $0x88] sm:$0xff]
    %v106 = vld [vmem:[%s2 + $0x90] sm:$0xff]
    %v107 = vld [vmem:[%s2 + $0xd8] sm:$0xff]
    %v108 = vld [vmem:[%s2 + $0xe0] sm:$0xff]
    %v109 = vld [vmem:[%s2 + $0xe8] sm:$0xff]
    %v110 = vld [vmem:[%s2 + $0x130] sm:$0xff]
    %v111 = vld [vmem:[%s2 + $0x138] sm:$0xff]
    %v112 = vld [vmem:[%s2 + $0x140] sm:$0xff]
    %v113 = vld [vmem:[%s2 + $0x188] sm:$0xff]
    %v114 = vld [vmem:[%s2 + $0x190] sm:$0xff]
    %v115 = vld [vmem:[%s2 + $0x198] sm:$0xff]
    %v116 = vld [vmem:[%s2 + $0x1e0] sm:$0xff]
    %v117 = vld [vmem:[%s2 + $0x1e8] sm:$0xff]
    %v118 = vld [vmem:[%s2 + $0x1f0] sm:$0xff]
    %v119 = vld [vmem:[%s2 + $0x238] sm:$0xff]
    %v120 = vld [vmem:[%s2 + $0x240] sm:$0xff]
    %v121 = vld [vmem:[%s2 + $0x248] sm:$0xff]
    %v122 = vld [vmem:[%s2 + $0x290] sm:$0xff]
    %v123 = vld [vmem:[%s2 + $0x298] sm:$0xff]
    %v124 = vld [vmem:[%s2 + $0x2a0] sm:$0xff]
    %v125 = vld [vmem:[%s2 + $0x2e8] sm:$0xff]
    %v126 = vld [vmem:[%s2 + $0x2f0] sm:$0xff]
    %v127 = vld [vmem:[%s2 + $0x2f8] sm:$0xff]
    %v128 = vld [vmem:[%s2 + $0x340] sm:$0xff]
    %v129 = vld [vmem:[%s2 + $0x348] sm:$0xff]
    %v130 = vld [vmem:[%s2 + $0x350] sm:$0xff]
    %v131 = vld [vmem:[%s2 + $0x398] sm:$0xff]
    %v132 = vld [vmem:[%s2 + $0x3a0] sm:$0xff]
    %v133 = vld [vmem:[%s2 + $0x3a8] sm:$0xff]
    %v134 = vld [vmem:[%s2 + $0x3f0] sm:$0xff]
    %v135 = vld [vmem:[%s2 + $0x3f8] sm:$0xff]
    %v136 = vld [vmem:[%s2 + $0x400] sm:$0xff]
    %v137 = vld [vmem:[%s2 + $0x448] sm:$0xff]
    %v138 = vld [vmem:[%s2 + $0x450] sm:$0xff]
    %v139 = vld [vmem:[%s2 + $0x458] sm:$0xff]
    %v140 = vld [vmem:[%s2 + $0x4a0] sm:$0xff]
    %v141 = vld [vmem:[%s2 + $0x4a8] sm:$0xff]
    %v142 = vld [vmem:[%s2 + $0x4b0] sm:$0xff]
    %v143 = vld [vmem:[%s2 + $0x4f8] sm:$0xff]
    %v144 = vld [vmem:[%s2 + $0x500] sm:$0xff]
    %v145 = vld [vmem:[%s2 + $0x508] sm:$0xff]
    %v146 = vld [vmem:[%s2 + $0x550] sm:$0xff]
    %v147 = vld [vmem:[%s2 + $0x558] sm:$0xff]
    %v148 = vld [vmem:[%s2 + $0x560] sm:$0xff]
    %v149 = vld [vmem:[%s2 + $0x40] sm:$0xff]
    %v150 = vld [vmem:[%s2 + $0x48] sm:$0xff]
    %v151 = vld [vmem:[%s2 + $0x50] sm:$0xff]
    %v152 = vld [vmem:[%s2 + $0x98] sm:$0xff]
    %v153 = vld [vmem:[%s2 + $0xa0] sm:$0xff]
    %v154 = vld [vmem:[%s2 + $0xa8] sm:$0xff]
    %v155 = vld [vmem:[%s2 + $0xf0] sm:$0xff]
    %v156 = vld [vmem:[%s2 + $0xf8] sm:$0xff]
    %v157 = vld [vmem:[%s2 + $0x100] sm:$0xff]
    %v158 = vld [vmem:[%s2 + $0x148] sm:$0xff]
    %v159 = vld [vmem:[%s2 + $0x150] sm:$0xff]
    %v160 = vld [vmem:[%s2 + $0x158] sm:$0xff]
    %v161 = vld [vmem:[%s2 + $0x1a0] sm:$0xff]
    %v162 = vld [vmem:[%s2 + $0x1a8] sm:$0xff]
    %v163 = vld [vmem:[%s2 + $0x1b0] sm:$0xff]
    %v164 = vld [vmem:[%s2 + $0x1f8] sm:$0xff]
    %v165 = vld [vmem:[%s2 + $0x200] sm:$0xff]
    %v166 = vld [vmem:[%s2 + $0x208] sm:$0xff]
    %v167 = vld [vmem:[%s2 + $0x250] sm:$0xff]
    %v168 = vld [vmem:[%s2 + $0x258] sm:$0xff]
    %v169 = vld [vmem:[%s2 + $0x260] sm:$0xff]
    %v170 = vld [vmem:[%s2 + $0x2a8] sm:$0xff]
    %v171 = vld [vmem:[%s2 + $0x2b0] sm:$0xff]
    %v172 = vld [vmem:[%s2 + $0x2b8] sm:$0xff]
    %v173 = vld [vmem:[%s2 + $0x300] sm:$0xff]
    %v174 = vld [vmem:[%s2 + $0x308] sm:$0xff]
    %v175 = vld [vmem:[%s2 + $0x310] sm:$0xff]
    %v176 = vld [vmem:[%s2 + $0x358] sm:$0xff]
    %v177 = vld [vmem:[%s2 + $0x360] sm:$0xff]
    %v178 = vld [vmem:[%s2 + $0x368] sm:$0xff]
    %v179 = vld [vmem:[%s2 + $0x3b0] sm:$0xff]
    %v180 = vld [vmem:[%s2 + $0x3b8] sm:$0xff]
    %v181 = vld [vmem:[%s2 + $0x3c0] sm:$0xff]
    %v182 = vld [vmem:[%s2 + $0x408] sm:$0xff]
    %v183 = vld [vmem:[%s2 + $0x410] sm:$0xff]
    %v184 = vld [vmem:[%s2 + $0x418] sm:$0xff]
    %v185 = vld [vmem:[%s2 + $0x460] sm:$0xff]
    %v186 = vld [vmem:[%s2 + $0x468] sm:$0xff]
    %v187 = vld [vmem:[%s2 + $0x470] sm:$0xff]
    %v188 = vld [vmem:[%s2 + $0x4b8] sm:$0xff]
    %v189 = vld [vmem:[%s2 + $0x4c0] sm:$0xff]
    %v190 = vld [vmem:[%s2 + $0x4c8] sm:$0xff]
    %v191 = vld [vmem:[%s2 + $0x510] sm:$0xff]
    %v192 = vld [vmem:[%s2 + $0x518] sm:$0xff]
    %v193 = vld [vmem:[%s2 + $0x520] sm:$0xff]
    %v194 = vld [vmem:[%s2 + $0x568] sm:$0xff]
    %v195 = vld [vmem:[%s2 + $0x570] sm:$0xff]
    %v196 = vld [vmem:[%s2 + $0x578] sm:$0xff]
    %v197 = vld [vmem:[%s1] sm:$0xff]
    %v198 = vld [vmem:[%s1 + $0x8] sm:$0xff]
    %199 = vmatprep.subr.mxu0 %v97
    %200 = vmatpush1.msra.mxu0 %v96
    %201 = vmatprep.subr.mxu0 %v92
    %202 = vmatpush1.msra.mxu0 %v91
    %203 = vmatprep.subr.mxu0 %v87
    %204 = vmatpush1.msra.mxu0 %v86
    %205 = vmatprep.subr.mxu0 %v82
    %206 = vmatpush1.msra.mxu0 %v81
    %207 = vmatprep.subr.mxu0 %v77
    %208 = vmatpush1.msra.mxu0 %v76
    %209 = vmatprep.subr.mxu0 %v72
    %210 = vmatpush1.msra.mxu0 %v71
    %211 = vmatprep.subr.mxu0 %v67
    %212 = vmatpush1.msra.mxu0 %v66
    %213 = vmatprep.subr.mxu0 %v62
    %214 = vmatpush1.msra.mxu0 %v61
    %215 = vmatprep.subr.mxu0 %v57
    %216 = vmatpush1.msra.mxu0 %v56
    %217 = vmatprep.subr.mxu0 %v52
    %218 = vmatpush1.msra.mxu0 %v51
    %219 = vmatprep.subr.mxu0 %v47
    %220 = vmatpush1.msra.mxu0 %v46
    %221 = vmatprep.subr.mxu0 %v42
    %222 = vmatpush1.msra.mxu0 %v41
    %223 = vmatprep.subr.mxu0 %v37
    %224 = vmatpush1.msra.mxu0 %v36
    %225 = vmatprep.subr.mxu0 %v32
    %226 = vmatpush1.msra.mxu0 %v31
    %227 = vmatprep.subr.mxu0 %v27
    %228 = vmatpush1.msra.mxu0 %v26
    %229 = vmatprep.subr.mxu0 %v22
    %230 = vmatpush1.msra.mxu0 %v21
    %231 = vmatprep.subr.mxu0 0.0
    %232 = vmatpush2.msra.mxu0 0.0
    %233 = vmatprep.subr.mxu0 0.0
    %234 = vmatpush2.msra.mxu0 0.0
    %235 = vmatprep.subr.mxu0 0.0
    %236 = vmatpush2.msra.mxu0 0.0
    %237 = vmatprep.subr.mxu0 0.0
    %238 = vmatpush2.msra.mxu0 0.0
    %239 = vmatprep.subr.mxu0 0.0
    %240 = vmatpush2.msra.mxu0 0.0
    %241 = vmatprep.subr.mxu0 0.0
    %242 = vmatpush2.msra.mxu0 0.0
    %243 = vmatprep.subr.mxu0 0.0
    %244 = vmatpush2.msra.mxu0 0.0
    %245 = vmatprep.subr.mxu0 0.0
    %246 = vmatpush2.msra.mxu0 0.0
    %247 = vmatprep.subr.mxu0 0.0
    %248 = vmatpush2.msra.mxu0 0.0
    %249 = vmatprep.subr.mxu0 0.0
    %250 = vmatpush2.msra.mxu0 0.0
    %251 = vmatprep.subr.mxu0 0.0
    %252 = vmatpush2.msra.mxu0 0.0
    %253 = vmatprep.subr.mxu0 0.0
    %254 = vmatpush2.msra.mxu0 0.0
    %255 = vmatprep.subr.mxu0 0.0
    %256 = vmatpush2.msra.mxu0 0.0
    %257 = vmatprep.subr.mxu0 0.0
    %258 = vmatpush2.msra.mxu0 0.0
    %259 = vmatprep.subr.mxu0 0.0
    %260 = vmatpush2.msra.mxu0 0.0
    %261 = vmatprep.subr.mxu0 0.0
    %262 = vmatpush2.msra.mxu0 0.0
    %263 = vmatprep.mubr.f32.mxu0 0.0
    %264 = vmatmul.mubr.f32.gmra.mxu0 %v197
    %v265 = vpop.f32.mrf.mxu0
    %v266 = vadd.f32 0.0, %v265
    %v267 = vpop.f32.mrf.mxu0
    %v268 = vadd.f32 0.0, %v267
    %269 = vmatprep.mubr.f32.mxu0 0.0
    %270 = vmatmul.mubr.f32.gmra.mxu0 %v198
    %v271 = vpop.f32.mrf.mxu0
    %v272 = vadd.f32 0.0, %v271
    %v273 = vpop.f32.mrf.mxu0
    %v274 = vadd.f32 0.0, %v273
    %275 = vdwg.mxu0
    %276 = vmatprep.subr.mxu0 %v99
    %277 = vmatpush1.msra.mxu0 %v98
    %278 = vmatprep.subr.mxu0 %v94
    %279 = vmatpush1.msra.mxu0 %v93
    %280 = vmatprep.subr.mxu0 %v89
    %281 = vmatpush1.msra.mxu0 %v88
    %282 = vmatprep.subr.mxu0 %v84
    %283 = vmatpush1.msra.mxu0 %v83
    %284 = vmatprep.subr.mxu0 %v79
    %285 = vmatpush1.msra.mxu0 %v78
    %286 = vmatprep.subr.mxu0 %v74
    %287 = vmatpush1.msra.mxu0 %v73
    %288 = vmatprep.subr.mxu0 %v69
    %289 = vmatpush1.msra.mxu0 %v68
    %290 = vmatprep.subr.mxu0 %v64
    %291 = vmatpush1.msra.mxu0 %v63
    %292 = vmatprep.subr.mxu0 %v59
    %293 = vmatpush1.msra.mxu0 %v58
    %294 = vmatprep.subr.mxu0 %v54
    %295 = vmatpush1.msra.mxu0 %v53
    %296 = vmatprep.subr.mxu0 %v49
    %297 = vmatpush1.msra.mxu0 %v48
    %298 = vmatprep.subr.mxu0 %v44
    %299 = vmatpush1.msra.mxu0 %v43
    %300 = vmatprep.subr.mxu0 %v39
    %301 = vmatpush1.msra.mxu0 %v38
    %302 = vmatprep.subr.mxu0 %v34
    %303 = vmatpush1.msra.mxu0 %v33
    %304 = vmatprep.subr.mxu0 %v29
    %305 = vmatpush1.msra.mxu0 %v28
    %306 = vmatprep.subr.mxu0 %v24
    %307 = vmatpush1.msra.mxu0 %v23
    %308 = vmatprep.subr.mxu0 0.0
    %309 = vmatpush2.msra.mxu0 0.0
    %310 = vmatprep.subr.mxu0 0.0
    %311 = vmatpush2.msra.mxu0 0.0
    %312 = vmatprep.subr.mxu0 0.0
    %313 = vmatpush2.msra.mxu0 0.0
    %314 = vmatprep.subr.mxu0 0.0
    %315 = vmatpush2.msra.mxu0 0.0
    %316 = vmatprep.subr.mxu0 0.0
    %317 = vmatpush2.msra.mxu0 0.0
    %318 = vmatprep.subr.mxu0 0.0
    %319 = vmatpush2.msra.mxu0 0.0
    %320 = vmatprep.subr.mxu0 0.0
    %321 = vmatpush2.msra.mxu0 0.0
    %322 = vmatprep.subr.mxu0 0.0
    %323 = vmatpush2.msra.mxu0 0.0
    %324 = vmatprep.subr.mxu0 0.0
    %325 = vmatpush2.msra.mxu0 0.0
    %326 = vmatprep.subr.mxu0 0.0
    %327 = vmatpush2.msra.mxu0 0.0
    %328 = vmatprep.subr.mxu0 0.0
    %329 = vmatpush2.msra.mxu0 0.0
    %330 = vmatprep.subr.mxu0 0.0
    %331 = vmatpush2.msra.mxu0 0.0
    %332 = vmatprep.subr.mxu0 0.0
    %333 = vmatpush2.msra.mxu0 0.0
    %334 = vmatprep.subr.mxu0 0.0
    %335 = vmatpush2.msra.mxu0 0.0
    %336 = vmatprep.subr.mxu0 0.0
    %337 = vmatpush2.msra.mxu0 0.0
    %338 = vmatprep.subr.mxu0 0.0
    %339 = vmatpush2.msra.mxu0 0.0
    %340 = vmatprep.mubr.f32.mxu0 0.0
    %341 = vmatmul.mubr.f32.gmra.mxu0 %v197
    %v342 = vpop.f32.mrf.mxu0
    %v343 = vadd.f32 0.0, %v342
    %v344 = vpop.f32.mrf.mxu0
    %v345 = vadd.f32 0.0, %v344
    %346 = vmatprep.mubr.f32.mxu0 0.0
    %347 = vmatmul.mubr.f32.gmra.mxu0 %v198
    %v348 = vpop.f32.mrf.mxu0
    %v349 = vadd.f32 0.0, %v348
    %v350 = vpop.f32.mrf.mxu0
    %v351 = vadd.f32 0.0, %v350
    %352 = vdwg.mxu0
    %353 = vmatprep.subr.mxu0 0.0
    %354 = vmatpush1.msra.mxu0 %v100
    %355 = vmatprep.subr.mxu0 0.0
    %356 = vmatpush1.msra.mxu0 %v95
    %357 = vmatprep.subr.mxu0 0.0
    %358 = vmatpush1.msra.mxu0 %v90
    %359 = vmatprep.subr.mxu0 0.0
    %360 = vmatpush1.msra.mxu0 %v85
    %361 = vmatprep.subr.mxu0 0.0
    %362 = vmatpush1.msra.mxu0 %v80
    %363 = vmatprep.subr.mxu0 0.0
    %364 = vmatpush1.msra.mxu0 %v75
    %365 = vmatprep.subr.mxu0 0.0
    %366 = vmatpush1.msra.mxu0 %v70
    %367 = vmatprep.subr.mxu0 0.0
    %368 = vmatpush1.msra.mxu0 %v65
    %369 = vmatprep.subr.mxu0 0.0
    %370 = vmatpush1.msra.mxu0 %v60
    %371 = vmatprep.subr.mxu0 0.0
    %372 = vmatpush1.msra.mxu0 %v55
    %373 = vmatprep.subr.mxu0 0.0
    %374 = vmatpush1.msra.mxu0 %v50
    %375 = vmatprep.subr.mxu0 0.0
    %376 = vmatpush1.msra.mxu0 %v45
    %377 = vmatprep.subr.mxu0 0.0
    %378 = vmatpush1.msra.mxu0 %v40
    %379 = vmatprep.subr.mxu0 0.0
    %380 = vmatpush1.msra.mxu0 %v35
    %381 = vmatprep.subr.mxu0 0.0
    %382 = vmatpush1.msra.mxu0 %v30
    %383 = vmatprep.subr.mxu0 0.0
    %384 = vmatpush1.msra.mxu0 %v25
    %385 = vmatprep.subr.mxu0 0.0
    %386 = vmatpush2.msra.mxu0 0.0
    %387 = vmatprep.subr.mxu0 0.0
    %388 = vmatpush2.msra.mxu0 0.0
    %389 = vmatprep.subr.mxu0 0.0
    %390 = vmatpush2.msra.mxu0 0.0
    %391 = vmatprep.subr.mxu0 0.0
    %392 = vmatpush2.msra.mxu0 0.0
    %393 = vmatprep.subr.mxu0 0.0
    %394 = vmatpush2.msra.mxu0 0.0
    %395 = vmatprep.subr.mxu0 0.0
    %396 = vmatpush2.msra.mxu0 0.0
    %397 = vmatprep.subr.mxu0 0.0
    %398 = vmatpush2.msra.mxu0 0.0
    %399 = vmatprep.subr.mxu0 0.0
    %400 = vmatpush2.msra.mxu0 0.0
    %401 = vmatprep.subr.mxu0 0.0
    %402 = vmatpush2.msra.mxu0 0.0
    %403 = vmatprep.subr.mxu0 0.0
    %404 = vmatpush2.msra.mxu0 0.0
    %405 = vmatprep.subr.mxu0 0.0
    %406 = vmatpush2.msra.mxu0 0.0
    %407 = vmatprep.subr.mxu0 0.0
    %408 = vmatpush2.msra.mxu0 0.0
    %409 = vmatprep.subr.mxu0 0.0
    %410 = vmatpush2.msra.mxu0 0.0
    %411 = vmatprep.subr.mxu0 0.0
    %412 = vmatpush2.msra.mxu0 0.0
    %413 = vmatprep.subr.mxu0 0.0
    %414 = vmatpush2.msra.mxu0 0.0
    %415 = vmatprep.subr.mxu0 0.0
    %416 = vmatpush2.msra.mxu0 0.0
    %417 = vmatprep.mubr.f32.mxu0 0.0
    %418 = vmatmul.mubr.f32.gmra.mxu0 %v197
    %v419 = vpop.f32.mrf.mxu0
    %v420 = vadd.f32 0.0, %v419
    %v421 = vpop.f32.mrf.mxu0
    %422 = vmatprep.mubr.f32.mxu0 0.0
    %423 = vmatmul.mubr.f32.gmra.mxu0 %v198
    %v424 = vpop.f32.mrf.mxu0
    %v425 = vadd.f32 0.0, %v424
    %v426 = vpop.f32.mrf.mxu0
    %427 = vdwg.mxu0
    %v428 = vlaneseq
    %v429 = vshrl.u32 %v428, 7
    %v430 = vsub.s32 0, %v429
    %v431 = vrot.slane %v20, %v430
    %v432 = vadd.f32 %v266, %v431
    %v433 = vadd.f32 %v272, %v431
    %v434 = vlaneseq
    %v435 = vshrl.u32 %v434, 7
    %v436 = vsub.s32 1, %v435
    %v437 = vrot.slane %v20, %v436
    %v438 = vadd.f32 %v268, %v437
    %v439 = vadd.f32 %v274, %v437
    %v440 = vlaneseq
    %v441 = vshrl.u32 %v440, 7
    %v442 = vsub.s32 7, %v441
    %v443 = vrot.slane %v20, %v442
    %v444 = vadd.f32 %v420, %v443
    %v445 = vadd.f32 %v425, %v443
    %vm446 = vcmask 64512
    %v448 = vsel %vm446, %v18, 0
    %450 = vmatprep.subr.mxu0 0.0
    %451 = vmatpush1.msra.mxu0 0.0
    %452 = vmatprep.subr.mxu0 0.0
    %453 = vmatpush1.msra.mxu0 0.0
    %454 = vmatprep.subr.mxu0 0.0
    %455 = vmatpush1.msra.mxu0 0.0
    %456 = vmatprep.subr.mxu0 0.0
    %457 = vmatpush1.msra.mxu0 0.0
    %458 = vmatprep.subr.mxu0 0.0
    %459 = vmatpush1.msra.mxu0 0.0
    %460 = vmatprep.subr.mxu0 0.0
    %461 = vmatpush1.msra.mxu0 0.0
    %462 = vmatprep.subr.mxu0 0.0
    %463 = vmatpush1.msra.mxu0 0.0
    %464 = vmatprep.subr.mxu0 0.0
    %465 = vmatpush1.msra.mxu0 0.0
    %466 = vmatprep.subr.mxu0 0.0
    %467 = vmatpush1.msra.mxu0 0.0
    %468 = vmatprep.subr.mxu0 0.0
    %469 = vmatpush1.msra.mxu0 0.0
    %470 = vmatprep.subr.mxu0 0.0
    %471 = vmatpush1.msra.mxu0 0.0
    %472 = vmatprep.subr.mxu0 0.0
    %473 = vmatpush1.msra.mxu0 0.0
    %474 = vmatprep.subr.mxu0 0.0
    %475 = vmatpush1.msra.mxu0 0.0
    %476 = vmatprep.subr.mxu0 0.0
    %477 = vmatpush1.msra.mxu0 0.0
    %478 = vmatprep.subr.mxu0 0.0
    %479 = vmatpush1.msra.mxu0 0.0
    %480 = vmatprep.subr.mxu0 0.0
    %481 = vmatpush1.msra.mxu0 %v432
    %482 = vmatprep.subr.mxu0 0.0
    %483 = vmatpush2.msra.mxu0 0.0
    %484 = vmatprep.subr.mxu0 0.0
    %485 = vmatpush2.msra.mxu0 0.0
    %486 = vmatprep.subr.mxu0 0.0
    %487 = vmatpush2.msra.mxu0 0.0
    %488 = vmatprep.subr.mxu0 0.0
    %489 = vmatpush2.msra.mxu0 0.0
    %490 = vmatprep.subr.mxu0 0.0
    %491 = vmatpush2.msra.mxu0 0.0
    %492 = vmatprep.subr.mxu0 0.0
    %493 = vmatpush2.msra.mxu0 0.0
    %494 = vmatprep.subr.mxu0 0.0
    %495 = vmatpush2.msra.mxu0 0.0
    %496 = vmatprep.subr.mxu0 0.0
    %497 = vmatpush2.msra.mxu0 0.0
    %498 = vmatprep.subr.mxu0 0.0
    %499 = vmatpush2.msra.mxu0 0.0
    %500 = vmatprep.subr.mxu0 0.0
    %501 = vmatpush2.msra.mxu0 0.0
    %502 = vmatprep.subr.mxu0 0.0
    %503 = vmatpush2.msra.mxu0 0.0
    %504 = vmatprep.subr.mxu0 0.0
    %505 = vmatpush2.msra.mxu0 0.0
    %506 = vmatprep.subr.mxu0 0.0
    %507 = vmatpush2.msra.mxu0 0.0
    %508 = vmatprep.subr.mxu0 0.0
    %509 = vmatpush2.msra.mxu0 0.0
    %510 = vmatprep.subr.mxu0 0.0
    %511 = vmatpush2.msra.mxu0 0.0
    %512 = vmatprep.subr.mxu0 0.0
    %513 = vmatpush2.msra.mxu0 0.0
    %514 = vmatprep.mubr.f32.mxu0 0.0
    %515 = vmatmul.mubr.f32.gmra.mxu0 %v448
    %v516 = vpop.f32.mrf.mxu0
    %v517 = vadd.f32 0.0, %v516
    %v518 = vpop.f32.mrf.mxu0
    %519 = vdwg.mxu0
    %v521 = vsel %vm446, %v19, 0
    %523 = vmatprep.subr.mxu0 0.0
    %524 = vmatpush1.msra.mxu0 0.0
    %525 = vmatprep.subr.mxu0 0.0
    %526 = vmatpush1.msra.mxu0 0.0
    %527 = vmatprep.subr.mxu0 0.0
    %528 = vmatpush1.msra.mxu0 0.0
    %529 = vmatprep.subr.mxu0 0.0
    %530 = vmatpush1.msra.mxu0 0.0
    %531 = vmatprep.subr.mxu0 0.0
    %532 = vmatpush1.msra.mxu0 0.0
    %533 = vmatprep.subr.mxu0 0.0
    %534 = vmatpush1.msra.mxu0 0.0
    %535 = vmatprep.subr.mxu0 0.0
    %536 = vmatpush1.msra.mxu0 0.0
    %537 = vmatprep.subr.mxu0 0.0
    %538 = vmatpush1.msra.mxu0 0.0
    %539 = vmatprep.subr.mxu0 0.0
    %540 = vmatpush1.msra.mxu0 0.0
    %541 = vmatprep.subr.mxu0 0.0
    %542 = vmatpush1.msra.mxu0 0.0
    %543 = vmatprep.subr.mxu0 0.0
    %544 = vmatpush1.msra.mxu0 0.0
    %545 = vmatprep.subr.mxu0 0.0
    %546 = vmatpush1.msra.mxu0 0.0
    %547 = vmatprep.subr.mxu0 0.0
    %548 = vmatpush1.msra.mxu0 0.0
    %549 = vmatprep.subr.mxu0 0.0
    %550 = vmatpush1.msra.mxu0 0.0
    %551 = vmatprep.subr.mxu0 0.0
    %552 = vmatpush1.msra.mxu0 0.0
    %553 = vmatprep.subr.mxu0 0.0
    %554 = vmatpush1.msra.mxu0 %v433
    %555 = vmatprep.subr.mxu0 0.0
    %556 = vmatpush2.msra.mxu0 0.0
    %557 = vmatprep.subr.mxu0 0.0
    %558 = vmatpush2.msra.mxu0 0.0
    %559 = vmatprep.subr.mxu0 0.0
    %560 = vmatpush2.msra.mxu0 0.0
    %561 = vmatprep.subr.mxu0 0.0
    %562 = vmatpush2.msra.mxu0 0.0
    %563 = vmatprep.subr.mxu0 0.0
    %564 = vmatpush2.msra.mxu0 0.0
    %565 = vmatprep.subr.mxu0 0.0
    %566 = vmatpush2.msra.mxu0 0.0
    %567 = vmatprep.subr.mxu0 0.0
    %568 = vmatpush2.msra.mxu0 0.0
    %569 = vmatprep.subr.mxu0 0.0
    %570 = vmatpush2.msra.mxu0 0.0
    %571 = vmatprep.subr.mxu0 0.0
    %572 = vmatpush2.msra.mxu0 0.0
    %573 = vmatprep.subr.mxu0 0.0
    %574 = vmatpush2.msra.mxu0 0.0
    %575 = vmatprep.subr.mxu0 0.0
    %576 = vmatpush2.msra.mxu0 0.0
    %577 = vmatprep.subr.mxu0 0.0
    %578 = vmatpush2.msra.mxu0 0.0
    %579 = vmatprep.subr.mxu0 0.0
    %580 = vmatpush2.msra.mxu0 0.0
    %581 = vmatprep.subr.mxu0 0.0
    %582 = vmatpush2.msra.mxu0 0.0
    %583 = vmatprep.subr.mxu0 0.0
    %584 = vmatpush2.msra.mxu0 0.0
    %585 = vmatprep.subr.mxu0 0.0
    %586 = vmatpush2.msra.mxu0 0.0
    %587 = vmatprep.mubr.f32.mxu0 0.0
    %588 = vmatmul.mubr.f32.gmra.mxu0 %v521
    %v589 = vpop.f32.mrf.mxu0
    %v590 = vadd.f32 0.0, %v589
    %v591 = vpop.f32.mrf.mxu0
    %592 = vdwg.mxu0
    %v593 = vlaneseq
    %v594 = vshrl.u32 %v593, 7
    %v595 = vsub.s32 2, %v594
    %v596 = vrot.slane %v20, %v595
    %v597 = vadd.f32 %v517, %v596
    %v598 = vadd.f32 %v590, %v596
    %599 = vrot.lane.b32.xlu0 %v18, 120
    %v600 = vpop.permute.xlu0 %599
    %v601 = vsel %vm446, %v600, 0
    %603 = vmatprep.subr.mxu0 0.0
    %604 = vmatpush1.msra.mxu0 0.0
    %605 = vmatprep.subr.mxu0 0.0
    %606 = vmatpush1.msra.mxu0 0.0
    %607 = vmatprep.subr.mxu0 0.0
    %608 = vmatpush1.msra.mxu0 0.0
    %609 = vmatprep.subr.mxu0 0.0
    %610 = vmatpush1.msra.mxu0 0.0
    %611 = vmatprep.subr.mxu0 0.0
    %612 = vmatpush1.msra.mxu0 0.0
    %613 = vmatprep.subr.mxu0 0.0
    %614 = vmatpush1.msra.mxu0 0.0
    %615 = vmatprep.subr.mxu0 0.0
    %616 = vmatpush1.msra.mxu0 0.0
    %617 = vmatprep.subr.mxu0 0.0
    %618 = vmatpush1.msra.mxu0 0.0
    %619 = vmatprep.subr.mxu0 0.0
    %620 = vmatpush1.msra.mxu0 0.0
    %621 = vmatprep.subr.mxu0 0.0
    %622 = vmatpush1.msra.mxu0 0.0
    %623 = vmatprep.subr.mxu0 0.0
    %624 = vmatpush1.msra.mxu0 0.0
    %625 = vmatprep.subr.mxu0 0.0
    %626 = vmatpush1.msra.mxu0 0.0
    %627 = vmatprep.subr.mxu0 0.0
    %628 = vmatpush1.msra.mxu0 0.0
    %629 = vmatprep.subr.mxu0 0.0
    %630 = vmatpush1.msra.mxu0 0.0
    %631 = vmatprep.subr.mxu0 0.0
    %632 = vmatpush1.msra.mxu0 0.0
    %633 = vmatprep.subr.mxu0 0.0
    %634 = vmatpush1.msra.mxu0 %v438
    %635 = vmatprep.subr.mxu0 0.0
    %636 = vmatpush2.msra.mxu0 0.0
    %637 = vmatprep.subr.mxu0 0.0
    %638 = vmatpush2.msra.mxu0 0.0
    %639 = vmatprep.subr.mxu0 0.0
    %640 = vmatpush2.msra.mxu0 0.0
    %641 = vmatprep.subr.mxu0 0.0
    %642 = vmatpush2.msra.mxu0 0.0
    %643 = vmatprep.subr.mxu0 0.0
    %644 = vmatpush2.msra.mxu0 0.0
    %645 = vmatprep.subr.mxu0 0.0
    %646 = vmatpush2.msra.mxu0 0.0
    %647 = vmatprep.subr.mxu0 0.0
    %648 = vmatpush2.msra.mxu0 0.0
    %649 = vmatprep.subr.mxu0 0.0
    %650 = vmatpush2.msra.mxu0 0.0
    %651 = vmatprep.subr.mxu0 0.0
    %652 = vmatpush2.msra.mxu0 0.0
    %653 = vmatprep.subr.mxu0 0.0
    %654 = vmatpush2.msra.mxu0 0.0
    %655 = vmatprep.subr.mxu0 0.0
    %656 = vmatpush2.msra.mxu0 0.0
    %657 = vmatprep.subr.mxu0 0.0
    %658 = vmatpush2.msra.mxu0 0.0
    %659 = vmatprep.subr.mxu0 0.0
    %660 = vmatpush2.msra.mxu0 0.0
    %661 = vmatprep.subr.mxu0 0.0
    %662 = vmatpush2.msra.mxu0 0.0
    %663 = vmatprep.subr.mxu0 0.0
    %664 = vmatpush2.msra.mxu0 0.0
    %665 = vmatprep.subr.mxu0 0.0
    %666 = vmatpush2.msra.mxu0 0.0
    %667 = vmatprep.mubr.f32.mxu0 0.0
    %668 = vmatmul.mubr.f32.gmra.mxu0 %v601
    %v669 = vpop.f32.mrf.mxu0
    %v670 = vadd.f32 0.0, %v669
    %v671 = vpop.f32.mrf.mxu0
    %672 = vdwg.mxu0
    %673 = vrot.lane.b32.xlu0 %v19, 120
    %v674 = vpop.permute.xlu0 %673
    %v675 = vsel %vm446, %v674, 0
    %677 = vmatprep.subr.mxu0 0.0
    %678 = vmatpush1.msra.mxu0 0.0
    %679 = vmatprep.subr.mxu0 0.0
    %680 = vmatpush1.msra.mxu0 0.0
    %681 = vmatprep.subr.mxu0 0.0
    %682 = vmatpush1.msra.mxu0 0.0
    %683 = vmatprep.subr.mxu0 0.0
    %684 = vmatpush1.msra.mxu0 0.0
    %685 = vmatprep.subr.mxu0 0.0
    %686 = vmatpush1.msra.mxu0 0.0
    %687 = vmatprep.subr.mxu0 0.0
    %688 = vmatpush1.msra.mxu0 0.0
    %689 = vmatprep.subr.mxu0 0.0
    %690 = vmatpush1.msra.mxu0 0.0
    %691 = vmatprep.subr.mxu0 0.0
    %692 = vmatpush1.msra.mxu0 0.0
    %693 = vmatprep.subr.mxu0 0.0
    %694 = vmatpush1.msra.mxu0 0.0
    %695 = vmatprep.subr.mxu0 0.0
    %696 = vmatpush1.msra.mxu0 0.0
    %697 = vmatprep.subr.mxu0 0.0
    %698 = vmatpush1.msra.mxu0 0.0
    %699 = vmatprep.subr.mxu0 0.0
    %700 = vmatpush1.msra.mxu0 0.0
    %701 = vmatprep.subr.mxu0 0.0
    %702 = vmatpush1.msra.mxu0 0.0
    %703 = vmatprep.subr.mxu0 0.0
    %704 = vmatpush1.msra.mxu0 0.0
    %705 = vmatprep.subr.mxu0 0.0
    %706 = vmatpush1.msra.mxu0 0.0
    %707 = vmatprep.subr.mxu0 0.0
    %708 = vmatpush1.msra.mxu0 %v439
    %709 = vmatprep.subr.mxu0 0.0
    %710 = vmatpush2.msra.mxu0 0.0
    %711 = vmatprep.subr.mxu0 0.0
    %712 = vmatpush2.msra.mxu0 0.0
    %713 = vmatprep.subr.mxu0 0.0
    %714 = vmatpush2.msra.mxu0 0.0
    %715 = vmatprep.subr.mxu0 0.0
    %716 = vmatpush2.msra.mxu0 0.0
    %717 = vmatprep.subr.mxu0 0.0
    %718 = vmatpush2.msra.mxu0 0.0
    %719 = vmatprep.subr.mxu0 0.0
    %720 = vmatpush2.msra.mxu0 0.0
    %721 = vmatprep.subr.mxu0 0.0
    %722 = vmatpush2.msra.mxu0 0.0
    %723 = vmatprep.subr.mxu0 0.0
    %724 = vmatpush2.msra.mxu0 0.0
    %725 = vmatprep.subr.mxu0 0.0
    %726 = vmatpush2.msra.mxu0 0.0
    %727 = vmatprep.subr.mxu0 0.0
    %728 = vmatpush2.msra.mxu0 0.0
    %729 = vmatprep.subr.mxu0 0.0
    %730 = vmatpush2.msra.mxu0 0.0
    %731 = vmatprep.subr.mxu0 0.0
    %732 = vmatpush2.msra.mxu0 0.0
    %733 = vmatprep.subr.mxu0 0.0
    %734 = vmatpush2.msra.mxu0 0.0
    %735 = vmatprep.subr.mxu0 0.0
    %736 = vmatpush2.msra.mxu0 0.0
    %737 = vmatprep.subr.mxu0 0.0
    %738 = vmatpush2.msra.mxu0 0.0
    %739 = vmatprep.subr.mxu0 0.0
    %740 = vmatpush2.msra.mxu0 0.0
    %741 = vmatprep.mubr.f32.mxu0 0.0
    %742 = vmatmul.mubr.f32.gmra.mxu0 %v675
    %v743 = vpop.f32.mrf.mxu0
    %v744 = vadd.f32 0.0, %v743
    %v745 = vpop.f32.mrf.mxu0
    %746 = vdwg.mxu0
    %v747 = vlaneseq
    %v748 = vshrl.u32 %v747, 7
    %v749 = vsub.s32 3, %v748
    %v750 = vrot.slane %v20, %v749
    %v751 = vadd.f32 %v670, %v750
    %v752 = vadd.f32 %v744, %v750
    %753 = vmatprep.subr.mxu0 %v147
    %754 = vmatpush1.msra.mxu0 %v146
    %755 = vmatprep.subr.mxu0 %v144
    %756 = vmatpush1.msra.mxu0 %v143
    %757 = vmatprep.subr.mxu0 %v141
    %758 = vmatpush1.msra.mxu0 %v140
    %759 = vmatprep.subr.mxu0 %v138
    %760 = vmatpush1.msra.mxu0 %v137
    %761 = vmatprep.subr.mxu0 %v135
    %762 = vmatpush1.msra.mxu0 %v134
    %763 = vmatprep.subr.mxu0 %v132
    %764 = vmatpush1.msra.mxu0 %v131
    %765 = vmatprep.subr.mxu0 %v129
    %766 = vmatpush1.msra.mxu0 %v128
    %767 = vmatprep.subr.mxu0 %v126
    %768 = vmatpush1.msra.mxu0 %v125
    %769 = vmatprep.subr.mxu0 %v123
    %770 = vmatpush1.msra.mxu0 %v122
    %771 = vmatprep.subr.mxu0 %v120
    %772 = vmatpush1.msra.mxu0 %v119
    %773 = vmatprep.subr.mxu0 %v117
    %774 = vmatpush1.msra.mxu0 %v116
    %775 = vmatprep.subr.mxu0 %v114
    %776 = vmatpush1.msra.mxu0 %v113
    %777 = vmatprep.subr.mxu0 %v111
    %778 = vmatpush1.msra.mxu0 %v110
    %779 = vmatprep.subr.mxu0 %v108
    %780 = vmatpush1.msra.mxu0 %v107
    %781 = vmatprep.subr.mxu0 %v105
    %782 = vmatpush1.msra.mxu0 %v104
    %783 = vmatprep.subr.mxu0 %v102
    %784 = vmatpush1.msra.mxu0 %v101
    %785 = vmatprep.subr.mxu0 0.0
    %786 = vmatpush2.msra.mxu0 0.0
    %787 = vmatprep.subr.mxu0 0.0
    %788 = vmatpush2.msra.mxu0 0.0
    %789 = vmatprep.subr.mxu0 0.0
    %790 = vmatpush2.msra.mxu0 0.0
    %791 = vmatprep.subr.mxu0 0.0
    %792 = vmatpush2.msra.mxu0 0.0
    %793 = vmatprep.subr.mxu0 0.0
    %794 = vmatpush2.msra.mxu0 0.0
    %795 = vmatprep.subr.mxu0 0.0
    %796 = vmatpush2.msra.mxu0 0.0
    %797 = vmatprep.subr.mxu0 0.0
    %798 = vmatpush2.msra.mxu0 0.0
    %799 = vmatprep.subr.mxu0 0.0
    %800 = vmatpush2.msra.mxu0 0.0
    %801 = vmatprep.subr.mxu0 0.0
    %802 = vmatpush2.msra.mxu0 0.0
    %803 = vmatprep.subr.mxu0 0.0
    %804 = vmatpush2.msra.mxu0 0.0
    %805 = vmatprep.subr.mxu0 0.0
    %806 = vmatpush2.msra.mxu0 0.0
    %807 = vmatprep.subr.mxu0 0.0
    %808 = vmatpush2.msra.mxu0 0.0
    %809 = vmatprep.subr.mxu0 0.0
    %810 = vmatpush2.msra.mxu0 0.0
    %811 = vmatprep.subr.mxu0 0.0
    %812 = vmatpush2.msra.mxu0 0.0
    %813 = vmatprep.subr.mxu0 0.0
    %814 = vmatpush2.msra.mxu0 0.0
    %815 = vmatprep.subr.mxu0 0.0
    %816 = vmatpush2.msra.mxu0 0.0
    %817 = vmatprep.mubr.f32.mxu0 0.0
    %818 = vmatmul.mubr.f32.gmra.mxu0 %v597
    %v819 = vpop.f32.mrf.mxu0
    %v820 = vadd.f32 0.0, %v819
    %v821 = vpop.f32.mrf.mxu0
    %v822 = vadd.f32 0.0, %v821
    %823 = vmatprep.mubr.f32.mxu0 0.0
    %824 = vmatmul.mubr.f32.gmra.mxu0 %v598
    %v825 = vpop.f32.mrf.mxu0
    %v826 = vadd.f32 0.0, %v825
    %v827 = vpop.f32.mrf.mxu0
    %v828 = vadd.f32 0.0, %v827
    %829 = vdwg.mxu0
    %830 = vmatprep.subr.mxu0 0.0
    %831 = vmatpush1.msra.mxu0 %v148
    %832 = vmatprep.subr.mxu0 0.0
    %833 = vmatpush1.msra.mxu0 %v145
    %834 = vmatprep.subr.mxu0 0.0
    %835 = vmatpush1.msra.mxu0 %v142
    %836 = vmatprep.subr.mxu0 0.0
    %837 = vmatpush1.msra.mxu0 %v139
    %838 = vmatprep.subr.mxu0 0.0
    %839 = vmatpush1.msra.mxu0 %v136
    %840 = vmatprep.subr.mxu0 0.0
    %841 = vmatpush1.msra.mxu0 %v133
    %842 = vmatprep.subr.mxu0 0.0
    %843 = vmatpush1.msra.mxu0 %v130
    %844 = vmatprep.subr.mxu0 0.0
    %845 = vmatpush1.msra.mxu0 %v127
    %846 = vmatprep.subr.mxu0 0.0
    %847 = vmatpush1.msra.mxu0 %v124
    %848 = vmatprep.subr.mxu0 0.0
    %849 = vmatpush1.msra.mxu0 %v121
    %850 = vmatprep.subr.mxu0 0.0
    %851 = vmatpush1.msra.mxu0 %v118
    %852 = vmatprep.subr.mxu0 0.0
    %853 = vmatpush1.msra.mxu0 %v115
    %854 = vmatprep.subr.mxu0 0.0
    %855 = vmatpush1.msra.mxu0 %v112
    %856 = vmatprep.subr.mxu0 0.0
    %857 = vmatpush1.msra.mxu0 %v109
    %858 = vmatprep.subr.mxu0 0.0
    %859 = vmatpush1.msra.mxu0 %v106
    %860 = vmatprep.subr.mxu0 0.0
    %861 = vmatpush1.msra.mxu0 %v103
    %862 = vmatprep.subr.mxu0 0.0
    %863 = vmatpush2.msra.mxu0 0.0
    %864 = vmatprep.subr.mxu0 0.0
    %865 = vmatpush2.msra.mxu0 0.0
    %866 = vmatprep.subr.mxu0 0.0
    %867 = vmatpush2.msra.mxu0 0.0
    %868 = vmatprep.subr.mxu0 0.0
    %869 = vmatpush2.msra.mxu0 0.0
    %870 = vmatprep.subr.mxu0 0.0
    %871 = vmatpush2.msra.mxu0 0.0
    %872 = vmatprep.subr.mxu0 0.0
    %873 = vmatpush2.msra.mxu0 0.0
    %874 = vmatprep.subr.mxu0 0.0
    %875 = vmatpush2.msra.mxu0 0.0
    %876 = vmatprep.subr.mxu0 0.0
    %877 = vmatpush2.msra.mxu0 0.0
    %878 = vmatprep.subr.mxu0 0.0
    %879 = vmatpush2.msra.mxu0 0.0
    %880 = vmatprep.subr.mxu0 0.0
    %881 = vmatpush2.msra.mxu0 0.0
    %882 = vmatprep.subr.mxu0 0.0
    %883 = vmatpush2.msra.mxu0 0.0
    %884 = vmatprep.subr.mxu0 0.0
    %885 = vmatpush2.msra.mxu0 0.0
    %886 = vmatprep.subr.mxu0 0.0
    %887 = vmatpush2.msra.mxu0 0.0
    %888 = vmatprep.subr.mxu0 0.0
    %889 = vmatpush2.msra.mxu0 0.0
    %890 = vmatprep.subr.mxu0 0.0
    %891 = vmatpush2.msra.mxu0 0.0
    %892 = vmatprep.subr.mxu0 0.0
    %893 = vmatpush2.msra.mxu0 0.0
    %894 = vmatprep.mubr.f32.mxu0 0.0
    %895 = vmatmul.mubr.f32.gmra.mxu0 %v597
    %v896 = vpop.f32.mrf.mxu0
    %v897 = vadd.f32 0.0, %v896
    %v898 = vpop.f32.mrf.mxu0
    %899 = vmatprep.mubr.f32.mxu0 0.0
    %900 = vmatmul.mubr.f32.gmra.mxu0 %v598
    %v901 = vpop.f32.mrf.mxu0
    %v902 = vadd.f32 0.0, %v901
    %v903 = vpop.f32.mrf.mxu0
    %904 = vdwg.mxu0
    %905 = vmatprep.subr.mxu0 %v195
    %906 = vmatpush1.msra.mxu0 %v194
    %907 = vmatprep.subr.mxu0 %v192
    %908 = vmatpush1.msra.mxu0 %v191
    %909 = vmatprep.subr.mxu0 %v189
    %910 = vmatpush1.msra.mxu0 %v188
    %911 = vmatprep.subr.mxu0 %v186
    %912 = vmatpush1.msra.mxu0 %v185
    %913 = vmatprep.subr.mxu0 %v183
    %914 = vmatpush1.msra.mxu0 %v182
    %915 = vmatprep.subr.mxu0 %v180
    %916 = vmatpush1.msra.mxu0 %v179
    %917 = vmatprep.subr.mxu0 %v177
    %918 = vmatpush1.msra.mxu0 %v176
    %919 = vmatprep.subr.mxu0 %v174
    %920 = vmatpush1.msra.mxu0 %v173
    %921 = vmatprep.subr.mxu0 %v171
    %922 = vmatpush1.msra.mxu0 %v170
    %923 = vmatprep.subr.mxu0 %v168
    %924 = vmatpush1.msra.mxu0 %v167
    %925 = vmatprep.subr.mxu0 %v165
    %926 = vmatpush1.msra.mxu0 %v164
    %927 = vmatprep.subr.mxu0 %v162
    %928 = vmatpush1.msra.mxu0 %v161
    %929 = vmatprep.subr.mxu0 %v159
    %930 = vmatpush1.msra.mxu0 %v158
    %931 = vmatprep.subr.mxu0 %v156
    %932 = vmatpush1.msra.mxu0 %v155
    %933 = vmatprep.subr.mxu0 %v153
    %934 = vmatpush1.msra.mxu0 %v152
    %935 = vmatprep.subr.mxu0 %v150
    %936 = vmatpush1.msra.mxu0 %v149
    %937 = vmatprep.subr.mxu0 0.0
    %938 = vmatpush2.msra.mxu0 0.0
    %939 = vmatprep.subr.mxu0 0.0
    %940 = vmatpush2.msra.mxu0 0.0
    %941 = vmatprep.subr.mxu0 0.0
    %942 = vmatpush2.msra.mxu0 0.0
    %943 = vmatprep.subr.mxu0 0.0
    %944 = vmatpush2.msra.mxu0 0.0
    %945 = vmatprep.subr.mxu0 0.0
    %946 = vmatpush2.msra.mxu0 0.0
    %947 = vmatprep.subr.mxu0 0.0
    %948 = vmatpush2.msra.mxu0 0.0
    %949 = vmatprep.subr.mxu0 0.0
    %950 = vmatpush2.msra.mxu0 0.0
    %951 = vmatprep.subr.mxu0 0.0
    %952 = vmatpush2.msra.mxu0 0.0
    %953 = vmatprep.subr.mxu0 0.0
    %954 = vmatpush2.msra.mxu0 0.0
    %955 = vmatprep.subr.mxu0 0.0
    %956 = vmatpush2.msra.mxu0 0.0
    %957 = vmatprep.subr.mxu0 0.0
    %958 = vmatpush2.msra.mxu0 0.0
    %959 = vmatprep.subr.mxu0 0.0
    %960 = vmatpush2.msra.mxu0 0.0
    %961 = vmatprep.subr.mxu0 0.0
    %962 = vmatpush2.msra.mxu0 0.0
    %963 = vmatprep.subr.mxu0 0.0
    %964 = vmatpush2.msra.mxu0 0.0
    %965 = vmatprep.subr.mxu0 0.0
    %966 = vmatpush2.msra.mxu0 0.0
    %967 = vmatprep.subr.mxu0 0.0
    %968 = vmatpush2.msra.mxu0 0.0
    %969 = vmatprep.mubr.f32.mxu0 0.0
    %970 = vmatmul.mubr.f32.gmra.mxu0 %v751
    %v971 = vpop.f32.mrf.mxu0
    %v972 = vadd.f32 0.0, %v971
    %v973 = vpop.f32.mrf.mxu0
    %v974 = vadd.f32 0.0, %v973
    %975 = vmatprep.mubr.f32.mxu0 0.0
    %976 = vmatmul.mubr.f32.gmra.mxu0 %v752
    %v977 = vpop.f32.mrf.mxu0
    %v978 = vadd.f32 0.0, %v977
    %v979 = vpop.f32.mrf.mxu0
    %v980 = vadd.f32 0.0, %v979
    %981 = vdwg.mxu0
    %982 = vmatprep.subr.mxu0 0.0
    %983 = vmatpush1.msra.mxu0 %v196
    %984 = vmatprep.subr.mxu0 0.0
    %985 = vmatpush1.msra.mxu0 %v193
    %986 = vmatprep.subr.mxu0 0.0
    %987 = vmatpush1.msra.mxu0 %v190
    %988 = vmatprep.subr.mxu0 0.0
    %989 = vmatpush1.msra.mxu0 %v187
    %990 = vmatprep.subr.mxu0 0.0
    %991 = vmatpush1.msra.mxu0 %v184
    %992 = vmatprep.subr.mxu0 0.0
    %993 = vmatpush1.msra.mxu0 %v181
    %994 = vmatprep.subr.mxu0 0.0
    %995 = vmatpush1.msra.mxu0 %v178
    %996 = vmatprep.subr.mxu0 0.0
    %997 = vmatpush1.msra.mxu0 %v175
    %998 = vmatprep.subr.mxu0 0.0
    %999 = vmatpush1.msra.mxu0 %v172
    %1000 = vmatprep.subr.mxu0 0.0
    %1001 = vmatpush1.msra.mxu0 %v169
    %1002 = vmatprep.subr.mxu0 0.0
    %1003 = vmatpush1.msra.mxu0 %v166
    %1004 = vmatprep.subr.mxu0 0.0
    %1005 = vmatpush1.msra.mxu0 %v163
    %1006 = vmatprep.subr.mxu0 0.0
    %1007 = vmatpush1.msra.mxu0 %v160
    %1008 = vmatprep.subr.mxu0 0.0
    %1009 = vmatpush1.msra.mxu0 %v157
    %1010 = vmatprep.subr.mxu0 0.0
    %1011 = vmatpush1.msra.mxu0 %v154
    %1012 = vmatprep.subr.mxu0 0.0
    %1013 = vmatpush1.msra.mxu0 %v151
    %1014 = vmatprep.subr.mxu0 0.0
    %1015 = vmatpush2.msra.mxu0 0.0
    %1016 = vmatprep.subr.mxu0 0.0
    %1017 = vmatpush2.msra.mxu0 0.0
    %1018 = vmatprep.subr.mxu0 0.0
    %1019 = vmatpush2.msra.mxu0 0.0
    %1020 = vmatprep.subr.mxu0 0.0
    %1021 = vmatpush2.msra.mxu0 0.0
    %1022 = vmatprep.subr.mxu0 0.0
    %1023 = vmatpush2.msra.mxu0 0.0
    %1024 = vmatprep.subr.mxu0 0.0
    %1025 = vmatpush2.msra.mxu0 0.0
    %1026 = vmatprep.subr.mxu0 0.0
    %1027 = vmatpush2.msra.mxu0 0.0
    %1028 = vmatprep.subr.mxu0 0.0
    %1029 = vmatpush2.msra.mxu0 0.0
    %1030 = vmatprep.subr.mxu0 0.0
    %1031 = vmatpush2.msra.mxu0 0.0
    %1032 = vmatprep.subr.mxu0 0.0
    %1033 = vmatpush2.msra.mxu0 0.0
    %1034 = vmatprep.subr.mxu0 0.0
    %1035 = vmatpush2.msra.mxu0 0.0
    %1036 = vmatprep.subr.mxu0 0.0
    %1037 = vmatpush2.msra.mxu0 0.0
    %1038 = vmatprep.subr.mxu0 0.0
    %1039 = vmatpush2.msra.mxu0 0.0
    %1040 = vmatprep.subr.mxu0 0.0
    %1041 = vmatpush2.msra.mxu0 0.0
    %1042 = vmatprep.subr.mxu0 0.0
    %1043 = vmatpush2.msra.mxu0 0.0
    %1044 = vmatprep.subr.mxu0 0.0
    %1045 = vmatpush2.msra.mxu0 0.0
    %1046 = vmatprep.mubr.f32.mxu0 0.0
    %1047 = vmatmul.mubr.f32.gmra.mxu0 %v751
    %v1048 = vpop.f32.mrf.mxu0
    %v1049 = vadd.f32 0.0, %v1048
    %v1050 = vpop.f32.mrf.mxu0
    %1051 = vmatprep.mubr.f32.mxu0 0.0
    %1052 = vmatmul.mubr.f32.gmra.mxu0 %v752
    %v1053 = vpop.f32.mrf.mxu0
    %v1054 = vadd.f32 0.0, %v1053
    %v1055 = vpop.f32.mrf.mxu0
    %1056 = vdwg.mxu0
    %v1057 = vadd.f32 %v820, %v972
    %v1058 = vadd.f32 %v826, %v978
    %v1059 = vadd.f32 %v1057, %v343
    %v1060 = vadd.f32 %v1058, %v349
    %v1061 = vlaneseq
    %v1062 = vshrl.u32 %v1061, 7
    %v1063 = vsub.s32 4, %v1062
    %v1064 = vrot.slane %v20, %v1063
    %v1065 = vadd.f32 %v1059, %v1064
    %v1066 = vadd.f32 %v1060, %v1064
    %v1067 = vadd.f32 %v822, %v974
    %v1068 = vadd.f32 %v828, %v980
    %v1069 = vadd.f32 %v1067, %v345
    %v1070 = vadd.f32 %v1068, %v351
    %v1071 = vlaneseq
    %v1072 = vshrl.u32 %v1071, 7
    %v1073 = vsub.s32 5, %v1072
    %v1074 = vrot.slane %v20, %v1073
    %v1075 = vadd.f32 %v1069, %v1074
    %v1076 = vadd.f32 %v1070, %v1074
    %v1077 = vadd.f32 %v897, %v1049
    %v1078 = vadd.f32 %v902, %v1054
    %v1079 = vlaneseq
    %v1080 = vshrl.u32 %v1079, 7
    %v1081 = vsub.s32 6, %v1080
    %v1082 = vrot.slane %v20, %v1081
    %v1083 = vadd.f32 %v1077, %v1082
    %v1084 = vadd.f32 %v1078, %v1082
    %v1085 = vxor.u32 %v1065, 2147483648
    %v1086 = vxor.u32 %v1066, 2147483648
    %v1087 = vmul.f32 %v1085, 1.442695
    %v1088 = vpow.pop %v1087
    %v1089 = vmul.f32 %v1086, 1.442695
    %v1090 = vpow.pop %v1089
    %v1091 = vadd.f32 %v1088, 1.0
    %v1092 = vadd.f32 %v1090, 1.0
    %v1093 = vrcp.pop %v1091
    %v1094 = vmul.f32 1.0, %v1093
    %v1095 = vrcp.pop %v1092
    %v1096 = vmul.f32 1.0, %v1095
    %v1097 = vxor.u32 %v1075, 2147483648
    %v1098 = vxor.u32 %v1076, 2147483648
    %v1099 = vmul.f32 %v1097, 1.442695
    %v1100 = vpow.pop %v1099
    %v1101 = vmul.f32 %v1098, 1.442695
    %v1102 = vpow.pop %v1101
    %v1103 = vadd.f32 %v1100, 1.0
    %v1104 = vadd.f32 %v1102, 1.0
    %v1105 = vrcp.pop %v1103
    %v1106 = vmul.f32 1.0, %v1105
    %v1107 = vrcp.pop %v1104
    %v1108 = vmul.f32 1.0, %v1107
    %v1109 = vmul.f32 %v1094, %v444
    %v1110 = vmul.f32 %v1096, %v445
    %v1111 = vadd.f32 %v1083, %v1109
    %v1112 = vadd.f32 %v1084, %v1110
    %v1113 = vtanh.pop %v1111
    %v1114 = vtanh.pop %v1112
    %v1115 = vsub.f32 %v197, %v1113
    %v1116 = vsub.f32 %v198, %v1114
    %v1117 = vmul.f32 %v1106, %v1115
    %v1118 = vmul.f32 %v1108, %v1116
    %v1119 = vadd.f32 %v1113, %v1117
    %v1120 = vadd.f32 %v1114, %v1118
    %1121 = vst [vmem:[#allocation2] sm:$0xff] %v1119
    %1122 = vst [vmem:[#allocation2 + $0x8] sm:$0xff] %v1120
    // Predicated region
    $region18: #{gnn_forward_pallas.1} parent=1 // pred_check
      _
    $region19: #{gnn_forward_pallas.1} parent=1 // pred_check_branch
      %1124 = sbr.rel (0) target = $region21
    $region20: #{gnn_forward_pallas.1} parent=1 // pred_region
      %s1126 = ssub.s32 256, 256
      %1127 = vsyncadd [#allocation3], %s1126
      %s1128 = sshll.u32 [#allocation2], 4
      %s1129 = int_to_ptr.vmem [resolvable:$true] %s1128
      %1134 = dma.vmem_to_hbm [thread:$0]  %s1129, 256, %s4, [#allocation3], 128, 128, 8
    $region21: #{gnn_forward_pallas.1} parent=1 // pred_fallthru
      _
    // Predicated region
    $region22: #{gnn_forward_pallas.1} parent=1 // pred_check
      _
    $region23: #{gnn_forward_pallas.1} parent=1 // pred_check_branch
      %1136 = sbr.rel (0) target = $region25
    $region24: #{gnn_forward_pallas.1} parent=1 // pred_region
      %1137 = dma.done [#allocation3], 256
    $region25: #{gnn_forward_pallas.1} parent=1 // pred_fallthru
      _
    %1138 = vsyncpa [#allocation3], 1

</llo_original>
